<compile_context>
chip_gen: v7x
topology: tpu7x:2x2x1
jax: 0.10.0
libtpu: 0.0.40
codegen_flags: <defaults>
</compile_context>

<pallas_src>
import functools

import jax
import jax.numpy as jnp
from jax.experimental import pallas as pl
from jax.experimental.pallas import tpu as pltpu


_NEG_BIG = -1e30  # finite stand-in for -inf (avoids inf-inf NaNs on padded rows)


def _round_up(x, m):
    return ((x + m - 1) // m) * m


def _supcon_kernel(row_lab_ref, col_lab_ref, row_feat_ref, col_feat_ref,
                   out_ref, m_ref, l_ref, num_ref, cnt_ref,
                   *, inv_temp, scale, n_valid):
    # row_lab_ref : [TM, 1]  int32 label id per anchor row (-1 for padding)
    # col_lab_ref : [1, TN]  int32 label id per contrast column
    # row_feat_ref: [TM, Dp] anchor features (caller's dtype; bf16 OK)
    # col_feat_ref: [TN, Dp] contrast features
    # out_ref     : [TM, 128] per-anchor loss, broadcast across lanes (lane-dense)
    # scratch     : running max / exp-sum / positive-logit-sum / positive-count
    tm = row_feat_ref.shape[0]
    tn = col_feat_ref.shape[0]
    i = pl.program_id(0)          # anchor (row) tile   -- "parallel"
    j = pl.program_id(1)          # contrast (col) tile -- "arbitrary", innermost
    num_j = pl.num_programs(1)

    # ---- init running stats at the start of each row sweep ----
    @pl.when(j == 0)
    def _():
        m_ref[...] = jnp.full((tm, 1), _NEG_BIG, jnp.float32)
        l_ref[...] = jnp.zeros((tm, 1), jnp.float32)
        num_ref[...] = jnp.zeros((tm, 1), jnp.float32)
        cnt_ref[...] = jnp.zeros((tm, 1), jnp.float32)

    # ---- logits tile on the MXU: contract last dims (A @ B^T), f32 accumulate ----
    s = jax.lax.dot_general(
        row_feat_ref[...], col_feat_ref[...],
        dimension_numbers=(((1,), (1,)), ((), ())),
        preferred_element_type=jnp.float32,
    ) * inv_temp                                                  # [tm, tn] f32

    # ---- per-tile masks rebuilt from iota + labels (no NxN mask in HBM) ----
    grow = i * tm + jax.lax.broadcasted_iota(jnp.int32, (tm, tn), 0)
    gcol = j * tn + jax.lax.broadcasted_iota(jnp.int32, (tm, tn), 1)
    col_valid = gcol < n_valid                      # drop right-padding columns
    not_diag = grow != gcol                         # logits_mask (zero diagonal)
    denom_mask = jnp.logical_and(col_valid, not_diag)
    pos_mask = jnp.logical_and(row_lab_ref[...] == col_lab_ref[...], denom_mask)

    # ---- online (flash-style) log-sum-exp across column tiles ----
    m_prev = m_ref[...]
    m_tile = jnp.max(jnp.where(col_valid, s, _NEG_BIG), axis=1, keepdims=True)
    m_new = jnp.maximum(m_prev, m_tile)
    alpha = jnp.exp(m_prev - m_new)                               # [tm, 1]
    p = jnp.where(denom_mask, jnp.exp(s - m_new), 0.0)            # one exp / logit
    l_ref[...] = alpha * l_ref[...] + jnp.sum(p, axis=1, keepdims=True)
    m_ref[...] = m_new

    # ---- running positive-pair numerator / count (shift-independent) ----
    num_ref[...] += jnp.sum(jnp.where(pos_mask, s, 0.0), axis=1, keepdims=True)
    cnt_ref[...] += jnp.sum(pos_mask.astype(jnp.float32), axis=1, keepdims=True)

    # ---- epilogue: finalize per-anchor loss on the last column tile ----
    @pl.when(j == num_j - 1)
    def _():
        lse = m_ref[...] + jnp.log(l_ref[...])                    # [tm, 1]
        cnt = cnt_ref[...]
        mean_log_prob_pos = num_ref[...] / jnp.maximum(cnt, 1.0) - lse
        loss_rows = -scale * mean_log_prob_pos
        # Anchors with zero positives would be NaN in the PyTorch reference;
        # guard them to 0 (only padded rows / degenerate labels hit this).
        loss_rows = jnp.where(cnt > 0.0, loss_rows, 0.0)
        out_ref[...] = jnp.broadcast_to(loss_rows, out_ref.shape)  # lane-dense store


def supcon_loss(features, labels=None, mask=None, *, temperature=0.07,
                contrast_mode="all", base_temperature=None):
    """Pallas TPU implementation of SupConLoss.forward (contrast_mode='all')."""
    features = jnp.asarray(features)
    if features.ndim < 3:
        raise ValueError("`features` needs to be [bsz, n_views, ...], >=3 dims")
    if features.ndim > 3:
        features = features.reshape(features.shape[0], features.shape[1], -1)
    if contrast_mode == "one":
        # TODO(synk): contrast_mode='one' (anchor = view 0 only) not implemented.
        raise NotImplementedError("contrast_mode='one' not implemented")
    if contrast_mode != "all":
        raise ValueError(f"Unknown mode: {contrast_mode}")

    bsz, n_views, dim = features.shape
    n = bsz * n_views
    if base_temperature is None:
        # Matches the module's __init__, which sets base_temperature = temperature.
        base_temperature = temperature

    # ---- positive-pair identity per anchor row (full mask is built in-kernel) ----
    if labels is not None and mask is not None:
        raise ValueError("Cannot define both `labels` and `mask`")
    if mask is not None:
        # TODO(synk): arbitrary user-supplied [bsz,bsz] masks would need a tiled
        # mask input; only the labels / identity-mask paths are built in-kernel.
        raise NotImplementedError("explicit `mask` not supported; pass `labels`")
    if labels is None:
        ids = jnp.arange(bsz, dtype=jnp.int32)          # eye(bsz) positives
    else:
        labels = jnp.asarray(labels).reshape(-1)
        if labels.shape[0] != bsz:
            raise ValueError("Num of labels does not match num of features")
        ids = labels.astype(jnp.int32)

    # contrast_feature = cat(unbind(features, dim=1), dim=0) -> view-major [N, D]
    contrast_feature = jnp.swapaxes(features, 0, 1).reshape(n, dim)
    row_ids = jnp.tile(ids, n_views)                    # id of row i == ids[i % bsz]

    # ---- tiling / padding (lane dim -> multiple of 128, sublane tiles) ----
    d_pad = _round_up(dim, 128)
    if n >= 2048:
        tile = 256
    elif n >= 256:
        tile = 128
    else:
        tile = _round_up(n, 16)        # single tile; 16 keeps bf16 layouts legal
    tm = tn = tile
    n_pad = _round_up(n, tile)

    feat_p = contrast_feature
    if (n_pad, d_pad) != (n, dim):
        feat_p = jnp.pad(contrast_feature, ((0, n_pad - n), (0, d_pad - dim)))
    ids_p = row_ids
    if n_pad != n:
        ids_p = jnp.pad(row_ids, (0, n_pad - n), constant_values=-1)
    row_lab = ids_p.reshape(n_pad, 1)
    col_lab = ids_p.reshape(1, n_pad)

    grid = (n_pad // tm, n_pad // tn)

    kernel = functools.partial(
        _supcon_kernel,
        inv_temp=1.0 / float(temperature),
        scale=float(temperature) / float(base_temperature),
        n_valid=n,
    )

    itemsize = feat_p.dtype.itemsize
    cost = pl.CostEstimate(
        flops=2 * n_pad * n_pad * d_pad,
        transcendentals=n_pad * n_pad,
        bytes_accessed=int((grid[0] + 1) * n_pad * d_pad * itemsize
                           + n_pad * 128 * 4 + 2 * n_pad * 4),
    )

    out = pl.pallas_call(
        kernel,
        out_shape=jax.ShapeDtypeStruct((n_pad, 128), jnp.float32),
        grid_spec=pltpu.PrefetchScalarGridSpec(
            num_scalar_prefetch=0,
            grid=grid,
            in_specs=[
                pl.BlockSpec((tm, 1), lambda i, j: (i, 0)),        # row label ids
                pl.BlockSpec((1, tn), lambda i, j: (0, j)),        # col label ids
                pl.BlockSpec((tm, d_pad), lambda i, j: (i, 0)),    # anchor rows
                pl.BlockSpec((tn, d_pad), lambda i, j: (j, 0)),    # contrast cols
            ],
            out_specs=pl.BlockSpec((tm, 128), lambda i, j: (i, 0)),
            scratch_shapes=[
                pltpu.VMEM((tm, 1), jnp.float32),   # running row max
                pltpu.VMEM((tm, 1), jnp.float32),   # running exp-sum (denominator)
                pltpu.VMEM((tm, 1), jnp.float32),   # running positive-logit sum
                pltpu.VMEM((tm, 1), jnp.float32),   # running positive count
            ],
        ),
        compiler_params=pltpu.CompilerParams(
            dimension_semantics=("parallel", "arbitrary"),
            vmem_limit_bytes=48 * 1024 * 1024,
        ),
        cost_estimate=cost,
    )(row_lab, col_lab, feat_p, feat_p)

    per_anchor = out[:n, 0]
    # loss.view(anchor_count, batch_size).mean() == mean over all N anchors.
    return jnp.mean(per_anchor)


def _reference_supcon(features, labels=None, temperature=0.07):
    # Pure-JAX reference mirroring the PyTorch code (contrast_mode='all').
    features = features.reshape(features.shape[0], features.shape[1], -1)
    bsz, n_views, _ = features.shape
    if labels is None:
        base = jnp.eye(bsz, dtype=jnp.float32)
    else:
        labels = jnp.asarray(labels).reshape(-1, 1)
        base = (labels == labels.T).astype(jnp.float32)
    cf = jnp.concatenate([features[:, v] for v in range(n_views)], axis=0)
    adc = (cf @ cf.T) / temperature
    logits = adc - jnp.max(adc, axis=1, keepdims=True)
    n = bsz * n_views
    m = jnp.tile(base, (n_views, n_views))
    logits_mask = 1.0 - jnp.eye(n, dtype=jnp.float32)
    m = m * logits_mask
    exp_logits = jnp.exp(logits) * logits_mask
    log_prob = logits - jnp.log(jnp.sum(exp_logits, axis=1, keepdims=True))
    mlpp = jnp.sum(m * log_prob, axis=1) / jnp.sum(m, axis=1)
    return jnp.mean(-mlpp)


if __name__ == "__main__":
    key = jax.random.PRNGKey(0)

    # features: [bsz=4, n_views=2, C=8, H=4, W=4] -> flattened feature dim 128.
    bsz, n_views, c, h, w = 4, 2, 8, 4, 4
    feats = jax.random.normal(key, (bsz, n_views, c, h, w), dtype=jnp.float32)
    flat = feats.reshape(bsz, n_views, -1)
    flat = flat / jnp.linalg.norm(flat, axis=-1, keepdims=True)
    feats = flat.reshape(bsz, n_views, c, h, w)

    # labels=None (identity-mask) path.
    loss = jax.block_until_ready(supcon_loss(feats, temperature=0.07))
    ref = _reference_supcon(feats, temperature=0.07)
    assert jnp.isfinite(loss), loss
    assert jnp.allclose(loss, ref, rtol=1e-4, atol=1e-4), (loss, ref)

    # labels path (multiple positives per anchor).
    labels = jnp.array([0, 1, 0, 1], dtype=jnp.int32)
    loss_lab = jax.block_until_ready(supcon_loss(feats, labels=labels, temperature=0.07))
    ref_lab = _reference_supcon(feats, labels=labels, temperature=0.07)
    assert jnp.allclose(loss_lab, ref_lab, rtol=1e-4, atol=1e-4), (loss_lab, ref_lab)

    # Multi-tile path: N = 320 -> 128-wide tiles, 3x3 grid, padded to 384.
    bsz2, n_views2, d2 = 160, 2, 128
    feats2 = jax.random.normal(jax.random.PRNGKey(1), (bsz2, n_views2, d2),
                               dtype=jnp.float32)
    feats2 = feats2 / jnp.linalg.norm(feats2, axis=-1, keepdims=True)
    labels2 = jnp.arange(bsz2, dtype=jnp.int32) % 10
    loss2 = jax.block_until_ready(supcon_loss(feats2, labels=labels2, temperature=0.07))
    ref2 = _reference_supcon(feats2, labels=labels2, temperature=0.07)
    assert jnp.allclose(loss2, ref2, rtol=1e-4, atol=1e-4), (loss2, ref2)

    print("KERNEL_OK")
</pallas_src>

<mosaic_0001>
module attributes {stable_mosaic.version = 11 : i64} {
  func.func @_supcon_kernel(%arg0: i32, %arg1: i32, %arg2: memref<16x1xi32, #tpu.memory_space<vmem>>, %arg3: memref<1x16xi32, #tpu.memory_space<vmem>>, %arg4: memref<16x128xf32, #tpu.memory_space<vmem>>, %arg5: memref<16x128xf32, #tpu.memory_space<vmem>>, %arg6: memref<16x128xf32, #tpu.memory_space<vmem>>, %arg7: memref<16x1xf32, #tpu.memory_space<vmem>>, %arg8: memref<16x1xf32, #tpu.memory_space<vmem>>, %arg9: memref<16x1xf32, #tpu.memory_space<vmem>>, %arg10: memref<16x1xf32, #tpu.memory_space<vmem>>) attributes {dimension_semantics = [#tpu.dimension_semantics<parallel>, #tpu.dimension_semantics<arbitrary>], iteration_bounds = array<i64: 1, 1>, scalar_prefetch = 0 : i64, scratch_operands = 4 : i64, tpu.core_type = #tpu.core_type<tc>, window_params = [{transform_indices = @transform_0, window_bounds = array<i64: 16, 1>}, {transform_indices = @transform_1, window_bounds = array<i64: 1, 16>}, {transform_indices = @transform_2, window_bounds = array<i64: 16, 128>}, {transform_indices = @transform_3, window_bounds = array<i64: 16, 128>}, {transform_indices = @transform_4, window_bounds = array<i64: 16, 128>}]} {
    %c0_i32 = arith.constant 0 : i32
    %0 = arith.cmpi eq, %arg1, %c0_i32 : i32
    %1 = arith.extui %0 : i1 to i32
    %c0_i32_0 = arith.constant 0 : i32
    %2 = arith.cmpi ne, %1, %c0_i32_0 : i32
    scf.if %2 {
      %cst_35 = arith.constant -1.000000e+30 : f32
      %63 = vector.broadcast %cst_35 : f32 to vector<16x1xf32>
      %c0_36 = arith.constant 0 : index
      %c0_37 = arith.constant 0 : index
      %64 = vector.load %arg7[%c0_36, %c0_37] : memref<16x1xf32, #tpu.memory_space<vmem>>, vector<16x1xf32>
      tpu.vector_store %arg7[%c0_36, %c0_37], %63 {strides = array<i32>} : memref<16x1xf32, #tpu.memory_space<vmem>>, vector<16x1xf32>,
      %cst_38 = arith.constant 0.000000e+00 : f32
      %65 = vector.broadcast %cst_38 : f32 to vector<16x1xf32>
      %c0_39 = arith.constant 0 : index
      %c0_40 = arith.constant 0 : index
      %66 = vector.load %arg8[%c0_39, %c0_40] : memref<16x1xf32, #tpu.memory_space<vmem>>, vector<16x1xf32>
      tpu.vector_store %arg8[%c0_39, %c0_40], %65 {strides = array<i32>} : memref<16x1xf32, #tpu.memory_space<vmem>>, vector<16x1xf32>,
      %cst_41 = arith.constant 0.000000e+00 : f32
      %67 = vector.broadcast %cst_41 : f32 to vector<16x1xf32>
      %c0_42 = arith.constant 0 : index
      %c0_43 = arith.constant 0 : index
      %68 = vector.load %arg9[%c0_42, %c0_43] : memref<16x1xf32, #tpu.memory_space<vmem>>, vector<16x1xf32>
      tpu.vector_store %arg9[%c0_42, %c0_43], %67 {strides = array<i32>} : memref<16x1xf32, #tpu.memory_space<vmem>>, vector<16x1xf32>,
      %cst_44 = arith.constant 0.000000e+00 : f32
      %69 = vector.broadcast %cst_44 : f32 to vector<16x1xf32>
      %c0_45 = arith.constant 0 : index
      %c0_46 = arith.constant 0 : index
      %70 = vector.load %arg10[%c0_45, %c0_46] : memref<16x1xf32, #tpu.memory_space<vmem>>, vector<16x1xf32>
      tpu.vector_store %arg10[%c0_45, %c0_46], %69 {strides = array<i32>} : memref<16x1xf32, #tpu.memory_space<vmem>>, vector<16x1xf32>,
    } else {
    }
    %c0 = arith.constant 0 : index
    %c0_1 = arith.constant 0 : index
    %3 = vector.load %arg4[%c0, %c0_1] : memref<16x128xf32, #tpu.memory_space<vmem>>, vector<16x128xf32>
    %c0_2 = arith.constant 0 : index
    %c0_3 = arith.constant 0 : index
    %4 = vector.load %arg5[%c0_2, %c0_3] : memref<16x128xf32, #tpu.memory_space<vmem>>, vector<16x128xf32>
    %cst = arith.constant dense<0.000000e+00> : vector<16x16xf32>
    %5 = tpu.matmul %3, %4, %cst {dimension_numbers = #tpu.dot_dimension_numbers<[1], [1], [0], [0], [0, 0, 1, 0], [], []>} : vector<16x128xf32>, vector<16x128xf32>, vector<16x16xf32> -> vector<16x16xf32>
    %cst_4 = arith.constant 14.2857141 : f32
    %6 = vector.broadcast %cst_4 : f32 to vector<16x16xf32>
    %7 = arith.mulf %5, %6 : vector<16x16xf32>
    %c16_i32 = arith.constant 16 : i32
    %8 = arith.muli %arg0, %c16_i32 : i32
    %9 = tpu.iota {dimensions = array<i32: 0>} : vector<16x16xi32>
    %10 = vector.broadcast %8 : i32 to vector<16x16xi32>
    %11 = arith.addi %10, %9 : vector<16x16xi32>
    %c16_i32_5 = arith.constant 16 : i32
    %12 = arith.muli %arg1, %c16_i32_5 : i32
    %13 = tpu.iota {dimensions = array<i32: 1>} : vector<16x16xi32>
    %14 = vector.broadcast %12 : i32 to vector<16x16xi32>
    %15 = arith.addi %14, %13 : vector<16x16xi32>
    %c8_i32 = arith.constant 8 : i32
    %16 = vector.broadcast %c8_i32 : i32 to vector<16x16xi32>
    %17 = arith.cmpi slt, %15, %16 : vector<16x16xi32>
    %18 = arith.cmpi ne, %11, %15 : vector<16x16xi32>
    %19 = arith.andi %17, %18 : vector<16x16xi1>
    %c0_6 = arith.constant 0 : index
    %c0_7 = arith.constant 0 : index
    %20 = vector.load %arg2[%c0_6, %c0_7] : memref<16x1xi32, #tpu.memory_space<vmem>>, vector<16x1xi32>
    %c0_8 = arith.constant 0 : index
    %c0_9 = arith.constant 0 : index
    %21 = vector.load %arg3[%c0_8, %c0_9] : memref<1x16xi32, #tpu.memory_space<vmem>>, vector<1x16xi32>
    %22 = vector.broadcast %20 : vector<16x1xi32> to vector<16x16xi32>
    %23 = vector.broadcast %21 : vector<1x16xi32> to vector<16x16xi32>
    %24 = arith.cmpi eq, %22, %23 : vector<16x16xi32>
    %25 = arith.andi %24, %19 : vector<16x16xi1>
    %c0_10 = arith.constant 0 : index
    %c0_11 = arith.constant 0 : index
    %26 = vector.load %arg7[%c0_10, %c0_11] : memref<16x1xf32, #tpu.memory_space<vmem>>, vector<16x1xf32>
    %cst_12 = arith.constant -1.000000e+30 : f32
    %27 = vector.broadcast %cst_12 : f32 to vector<16x16xf32>
    %28 = arith.select %17, %7, %27 : vector<16x16xi1>, vector<16x16xf32>
    %cst_13 = arith.constant dense<0xFF800000> : vector<16xf32>
    %29 = vector.multi_reduction <maximumf>, %28, %cst_13 [1] : vector<16x16xf32> to vector<16xf32>
    %30 = vector.shape_cast %29 : vector<16xf32> to vector<16x1xf32>
    %31 = arith.maximumf %26, %30 : vector<16x1xf32>
    %32 = arith.subf %26, %31 : vector<16x1xf32>
    %33 = math.exp %32 : vector<16x1xf32>
    %34 = vector.broadcast %31 : vector<16x1xf32> to vector<16x16xf32>
    %35 = arith.subf %7, %34 : vector<16x16xf32>
    %36 = math.exp %35 : vector<16x16xf32>
    %cst_14 = arith.constant 0.000000e+00 : f32
    %37 = vector.broadcast %cst_14 : f32 to vector<16x16xf32>
    %38 = arith.select %19, %36, %37 : vector<16x16xi1>, vector<16x16xf32>
    %c0_15 = arith.constant 0 : index
    %c0_16 = arith.constant 0 : index
    %39 = vector.load %arg8[%c0_15, %c0_16] : memref<16x1xf32, #tpu.memory_space<vmem>>, vector<16x1xf32>
    %40 = arith.mulf %33, %39 : vector<16x1xf32>
    %cst_17 = arith.constant dense<0.000000e+00> : vector<16xf32>
    %41 = vector.multi_reduction <add>, %38, %cst_17 [1] : vector<16x16xf32> to vector<16xf32>
    %42 = vector.shape_cast %41 : vector<16xf32> to vector<16x1xf32>
    %43 = arith.addf %40, %42 : vector<16x1xf32>
    %c0_18 = arith.constant 0 : index
    %c0_19 = arith.constant 0 : index
    %44 = vector.load %arg8[%c0_18, %c0_19] : memref<16x1xf32, #tpu.memory_space<vmem>>, vector<16x1xf32>
    tpu.vector_store %arg8[%c0_18, %c0_19], %43 {strides = array<i32>} : memref<16x1xf32, #tpu.memory_space<vmem>>, vector<16x1xf32>,
    %c0_20 = arith.constant 0 : index
    %c0_21 = arith.constant 0 : index
    %45 = vector.load %arg7[%c0_20, %c0_21] : memref<16x1xf32, #tpu.memory_space<vmem>>, vector<16x1xf32>
    tpu.vector_store %arg7[%c0_20, %c0_21], %31 {strides = array<i32>} : memref<16x1xf32, #tpu.memory_space<vmem>>, vector<16x1xf32>,
    %c0_22 = arith.constant 0 : index
    %c0_23 = arith.constant 0 : index
    %46 = vector.load %arg9[%c0_22, %c0_23] : memref<16x1xf32, #tpu.memory_space<vmem>>, vector<16x1xf32>
    %cst_24 = arith.constant 0.000000e+00 : f32
    %47 = vector.broadcast %cst_24 : f32 to vector<16x16xf32>
    %48 = arith.select %25, %7, %47 : vector<16x16xi1>, vector<16x16xf32>
    %cst_25 = arith.constant dense<0.000000e+00> : vector<16xf32>
    %49 = vector.multi_reduction <add>, %48, %cst_25 [1] : vector<16x16xf32> to vector<16xf32>
    %50 = vector.shape_cast %49 : vector<16xf32> to vector<16x1xf32>
    %51 = arith.addf %46, %50 : vector<16x1xf32>
    %c0_26 = arith.constant 0 : index
    %c0_27 = arith.constant 0 : index
    %52 = vector.load %arg9[%c0_26, %c0_27] : memref<16x1xf32, #tpu.memory_space<vmem>>, vector<16x1xf32>
    tpu.vector_store %arg9[%c0_26, %c0_27], %51 {strides = array<i32>} : memref<16x1xf32, #tpu.memory_space<vmem>>, vector<16x1xf32>,
    %c0_28 = arith.constant 0 : index
    %c0_29 = arith.constant 0 : index
    %53 = vector.load %arg10[%c0_28, %c0_29] : memref<16x1xf32, #tpu.memory_space<vmem>>, vector<16x1xf32>
    %54 = arith.extui %25 : vector<16x16xi1> to vector<16x16xi32>
    %55 = arith.sitofp %54 : vector<16x16xi32> to vector<16x16xf32>
    %cst_30 = arith.constant dense<0.000000e+00> : vector<16xf32>
    %56 = vector.multi_reduction <add>, %55, %cst_30 [1] : vector<16x16xf32> to vector<16xf32>
    %57 = vector.shape_cast %56 : vector<16xf32> to vector<16x1xf32>
    %58 = arith.addf %53, %57 : vector<16x1xf32>
    %c0_31 = arith.constant 0 : index
    %c0_32 = arith.constant 0 : index
    %59 = vector.load %arg10[%c0_31, %c0_32] : memref<16x1xf32, #tpu.memory_space<vmem>>, vector<16x1xf32>
    tpu.vector_store %arg10[%c0_31, %c0_32], %58 {strides = array<i32>} : memref<16x1xf32, #tpu.memory_space<vmem>>, vector<16x1xf32>,
    %c0_i32_33 = arith.constant 0 : i32
    %60 = arith.cmpi eq, %arg1, %c0_i32_33 : i32
    %61 = arith.extui %60 : i1 to i32
    %c0_i32_34 = arith.constant 0 : i32
    %62 = arith.cmpi ne, %61, %c0_i32_34 : i32
    scf.if %62 {
      %c0_35 = arith.constant 0 : index
      %c0_36 = arith.constant 0 : index
      %63 = vector.load %arg7[%c0_35, %c0_36] : memref<16x1xf32, #tpu.memory_space<vmem>>, vector<16x1xf32>
      %c0_37 = arith.constant 0 : index
      %c0_38 = arith.constant 0 : index
      %64 = vector.load %arg8[%c0_37, %c0_38] : memref<16x1xf32, #tpu.memory_space<vmem>>, vector<16x1xf32>
      %65 = math.log %64 : vector<16x1xf32>
      %66 = arith.addf %63, %65 : vector<16x1xf32>
      %c0_39 = arith.constant 0 : index
      %c0_40 = arith.constant 0 : index
      %67 = vector.load %arg10[%c0_39, %c0_40] : memref<16x1xf32, #tpu.memory_space<vmem>>, vector<16x1xf32>
      %c0_41 = arith.constant 0 : index
      %c0_42 = arith.constant 0 : index
      %68 = vector.load %arg9[%c0_41, %c0_42] : memref<16x1xf32, #tpu.memory_space<vmem>>, vector<16x1xf32>
      %cst_43 = arith.constant 1.000000e+00 : f32
      %69 = vector.broadcast %cst_43 : f32 to vector<16x1xf32>
      %70 = arith.maximumf %67, %69 : vector<16x1xf32>
      %71 = arith.divf %68, %70 : vector<16x1xf32>
      %72 = arith.subf %71, %66 : vector<16x1xf32>
      %cst_44 = arith.constant -1.000000e+00 : f32
      %73 = vector.broadcast %cst_44 : f32 to vector<16x1xf32>
      %74 = arith.mulf %73, %72 : vector<16x1xf32>
      %cst_45 = arith.constant 0.000000e+00 : f32
      %75 = vector.broadcast %cst_45 : f32 to vector<16x1xf32>
      %76 = arith.cmpf ogt, %67, %75 : vector<16x1xf32>
      %cst_46 = arith.constant 0.000000e+00 : f32
      %77 = vector.broadcast %cst_46 : f32 to vector<16x1xf32>
      %78 = arith.select %76, %74, %77 : vector<16x1xi1>, vector<16x1xf32>
      %79 = vector.shape_cast %78 : vector<16x1xf32> to vector<16x1xf32>
      %80 = vector.broadcast %79 : vector<16x1xf32> to vector<16x128xf32>
      %c0_47 = arith.constant 0 : index
      %c0_48 = arith.constant 0 : index
      %81 = vector.load %arg6[%c0_47, %c0_48] : memref<16x128xf32, #tpu.memory_space<vmem>>, vector<16x128xf32>
      tpu.vector_store %arg6[%c0_47, %c0_48], %80 {strides = array<i32>} : memref<16x128xf32, #tpu.memory_space<vmem>>, vector<16x128xf32>,
    } else {
    }
    return
  }
  func.func @transform_0(%arg0: i32, %arg1: i32) -> (i32, i32) {
    %c0_i32 = arith.constant 0 : i32
    %c0_i32_0 = arith.constant 0 : i32
    return %arg0, %c0_i32 : i32, i32
  }
  func.func @transform_1(%arg0: i32, %arg1: i32) -> (i32, i32) {
    %c0_i32 = arith.constant 0 : i32
    %c0_i32_0 = arith.constant 0 : i32
    return %c0_i32, %arg1 : i32, i32
  }
  func.func @transform_2(%arg0: i32, %arg1: i32) -> (i32, i32) {
    %c0_i32 = arith.constant 0 : i32
    %c0_i32_0 = arith.constant 0 : i32
    return %arg0, %c0_i32 : i32, i32
  }
  func.func @transform_3(%arg0: i32, %arg1: i32) -> (i32, i32) {
    %c0_i32 = arith.constant 0 : i32
    %c0_i32_0 = arith.constant 0 : i32
    return %arg1, %c0_i32 : i32, i32
  }
  func.func @transform_4(%arg0: i32, %arg1: i32) -> (i32, i32) {
    %c0_i32 = arith.constant 0 : i32
    %c0_i32_0 = arith.constant 0 : i32
    return %arg0, %c0_i32 : i32, i32
  }
}

</mosaic_0001>

<llo_original>
// kernel: tpu_custom_call.1
$region0: #{tpu_custom_call.1}
  #allocation0 [shape = 'u32[]', space=smem, size = 0x4, offset = 0x4, fixed_abs, tag = 'smem constant byte address 0x4 - core index']
  #allocation1 [shape = 'u32[144,128]{1,0:T(1,128)}', space=vmem, size = 0x12000, scoped, tag = 'internal scratch']
  #allocation2 [shape = 'f32[16,1]{1,0:T(8,128)}', space=vmem, size = 0x2000, scoped, tag = 'scratch operand']
  #allocation3 [shape = 'f32[16,1]{1,0:T(8,128)}', space=vmem, size = 0x2000, scoped, tag = 'scratch operand']
  #allocation4 [shape = 'f32[16,1]{1,0:T(8,128)}', space=vmem, size = 0x2000, scoped, tag = 'scratch operand']
  #allocation5 [shape = 'f32[16,1]{1,0:T(8,128)}', space=vmem, size = 0x2000, scoped, tag = 'scratch operand']
  %s0 = inlined_call_operand.vmem [shape: s32[16,1], index: 0, kind: input, shape index: {}]
  %s1 = inlined_call_operand.vmem [shape: s32[1,16], index: 1, kind: input, shape index: {}]
  %s2 = inlined_call_operand.vmem [shape: f32[16,128], index: 2, kind: input, shape index: {}]
  %s3 = inlined_call_operand.hbm [shape: f32[16,128], index: 3, kind: input, shape index: {}]
  %s4 = inlined_call_operand.hbm [shape: f32[16,128], index: 4, kind: output, shape index: {}]
  %s5 = sld [smem:[#allocation0]]
  $region38: #{tpu_custom_call.1} parent=0
    _
  %s7 = ssub.s32 1, %s5
  %s8 = scalar_select 0, %s7, %s5
  $region1: #{tpu_custom_call.1} parent=0
    #allocation6 [shape = 'u8[8192]{0}', space=vmem, size = 0x2000, scoped, tag = 'input window, operand 3, single buffered']
    #allocation7 [shape = 's32[1]{0}', space=sflag, size = 0x4, scoped, tag = 'scoped memory for tpu_custom_call.1']
    #allocation8 [shape = 's32[1]{0}', space=sflag, size = 0x4, scoped, tag = 'scoped memory for tpu_custom_call.1']
    #allocation9 [shape = 'u8[8192]{0}', space=vmem, size = 0x2000, scoped, tag = 'output window, operand 0, single buffered']
    %9 = vsyncpa [#allocation7], 0
    %10 = vsyncpa [#allocation8], 0
    // Predicated region
    $region2: #{tpu_custom_call.1} parent=1 // pred_check
      _
    $region3: #{tpu_custom_call.1} parent=1 // pred_check_branch
      %12 = sbr.rel (0) target = $region5
    $region4: #{tpu_custom_call.1} parent=1 // pred_region
      _
    $region5: #{tpu_custom_call.1} parent=1 // pred_fallthru
      _
    // Predicated region
    $region6: #{tpu_custom_call.1} parent=1 // pred_check
      _
    $region7: #{tpu_custom_call.1} parent=1 // pred_check_branch
      %14 = sbr.rel (0) target = $region9
    $region8: #{tpu_custom_call.1} parent=1 // pred_region
      _
    $region9: #{tpu_custom_call.1} parent=1 // pred_fallthru
      _
    // Predicated region
    $region10: #{tpu_custom_call.1} parent=1 // pred_check
      _
    $region11: #{tpu_custom_call.1} parent=1 // pred_check_branch
      %16 = sbr.rel (0) target = $region13
    $region12: #{tpu_custom_call.1} parent=1 // pred_region
      _
    $region13: #{tpu_custom_call.1} parent=1 // pred_fallthru
      _
    // Predicated region
    $region14: #{tpu_custom_call.1} parent=1 // pred_check
      _
    $region15: #{tpu_custom_call.1} parent=1 // pred_check_branch
      %18 = sbr.rel (0) target = $region17
    $region16: #{tpu_custom_call.1} parent=1 // pred_region
      %s20 = ssub.s32 256, 256
      %21 = vsyncadd [#allocation7], %s20
      %s22 = sshll.u32 [#allocation6], 4
      %s23 = int_to_ptr.vmem [resolvable:$true] %s22
      %28 = dma.hbm_to_vmem [thread:$0]  %s3, 256, %s23, [#allocation7], 128, 128, 8
    $region17: #{tpu_custom_call.1} parent=1 // pred_fallthru
      _
    // Predicated region
    $region18: #{tpu_custom_call.1} parent=1 // pred_check
      _
    $region19: #{tpu_custom_call.1} parent=1 // pred_check_branch
      %30 = sbr.rel (0) target = $region21
    $region20: #{tpu_custom_call.1} parent=1 // pred_region
      %31 = dma.done [#allocation7], 256
    $region21: #{tpu_custom_call.1} parent=1 // pred_fallthru
      _
    %p32 = scmp.eq.s32.totalorder 0, 0
    // Predicated region
    $region22: #{tpu_custom_call.1} parent=1 // pred_check
      %p33 = pneg %p32
    $region23: #{tpu_custom_call.1} parent=1 // pred_check_branch
      %35 = sbr.rel (%p33) target = $region25
    $region24: #{tpu_custom_call.1} parent=1 // pred_region
      %vm36 = vcmask 7168
      %37 = vst.msk [vmem:[#allocation2] sm:$0xff] %vm36, -1e+30
      %38 = vst.msk [vmem:[#allocation2 + $0x8] sm:$0xff] %vm36, -1e+30
      %39 = vst.msk [vmem:[#allocation3] sm:$0xff] %vm36, 0.0
      %40 = vst.msk [vmem:[#allocation3 + $0x8] sm:$0xff] %vm36, 0.0
      %41 = vst.msk [vmem:[#allocation4] sm:$0xff] %vm36, 0.0
      %42 = vst.msk [vmem:[#allocation4 + $0x8] sm:$0xff] %vm36, 0.0
      %43 = vst.msk [vmem:[#allocation5] sm:$0xff] %vm36, 0.0
      %44 = vst.msk [vmem:[#allocation5 + $0x8] sm:$0xff] %vm36, 0.0
    $region25: #{tpu_custom_call.1} parent=1 // pred_fallthru
      _
    %v45 = vld [vmem:[%s2] sm:$0xff]
    %v46 = vld [vmem:[%s2 + $0x8] sm:$0xff]
    %v47 = vld [vmem:[#allocation6] sm:$0xff]
    %v48 = vld [vmem:[#allocation6 + $0x8] sm:$0xff]
    %49 = vmatprep.subr.mxu0 0.0
    %50 = vmatpush1.xpose.msra.mxu0 %v47
    %51 = vmatprep.subr.mxu0 0.0
    %52 = vmatpush1.xpose.msra.mxu0 %v48
    %53 = vmatprep.subr.mxu0 0.0
    %54 = vmatpush1.xpose.msra.mxu0 0.0
    %55 = vmatprep.subr.mxu0 0.0
    %56 = vmatpush1.xpose.msra.mxu0 0.0
    %57 = vmatprep.subr.mxu0 0.0
    %58 = vmatpush1.xpose.msra.mxu0 0.0
    %59 = vmatprep.subr.mxu0 0.0
    %60 = vmatpush1.xpose.msra.mxu0 0.0
    %61 = vmatprep.subr.mxu0 0.0
    %62 = vmatpush1.xpose.msra.mxu0 0.0
    %63 = vmatprep.subr.mxu0 0.0
    %64 = vmatpush1.xpose.msra.mxu0 0.0
    %65 = vmatprep.subr.mxu0 0.0
    %66 = vmatpush1.xpose.msra.mxu0 0.0
    %67 = vmatprep.subr.mxu0 0.0
    %68 = vmatpush1.xpose.msra.mxu0 0.0
    %69 = vmatprep.subr.mxu0 0.0
    %70 = vmatpush1.xpose.msra.mxu0 0.0
    %71 = vmatprep.subr.mxu0 0.0
    %72 = vmatpush1.xpose.msra.mxu0 0.0
    %73 = vmatprep.subr.mxu0 0.0
    %74 = vmatpush1.xpose.msra.mxu0 0.0
    %75 = vmatprep.subr.mxu0 0.0
    %76 = vmatpush1.xpose.msra.mxu0 0.0
    %77 = vmatprep.subr.mxu0 0.0
    %78 = vmatpush1.xpose.msra.mxu0 0.0
    %79 = vmatprep.subr.mxu0 0.0
    %80 = vmatpush1.xpose.msra.mxu0 0.0
    %81 = vmatprep.subr.mxu0 0.0
    %82 = vmatpush1.xpose.msra.mxu0 0.0
    %83 = vmatprep.subr.mxu0 0.0
    %84 = vmatpush1.xpose.msra.mxu0 0.0
    %85 = vmatprep.subr.mxu0 0.0
    %86 = vmatpush1.xpose.msra.mxu0 0.0
    %87 = vmatprep.subr.mxu0 0.0
    %88 = vmatpush1.xpose.msra.mxu0 0.0
    %89 = vmatprep.subr.mxu0 0.0
    %90 = vmatpush1.xpose.msra.mxu0 0.0
    %91 = vmatprep.subr.mxu0 0.0
    %92 = vmatpush1.xpose.msra.mxu0 0.0
    %93 = vmatprep.subr.mxu0 0.0
    %94 = vmatpush1.xpose.msra.mxu0 0.0
    %95 = vmatprep.subr.mxu0 0.0
    %96 = vmatpush1.xpose.msra.mxu0 0.0
    %97 = vmatprep.subr.mxu0 0.0
    %98 = vmatpush1.xpose.msra.mxu0 0.0
    %99 = vmatprep.subr.mxu0 0.0
    %100 = vmatpush1.xpose.msra.mxu0 0.0
    %101 = vmatprep.subr.mxu0 0.0
    %102 = vmatpush1.xpose.msra.mxu0 0.0
    %103 = vmatprep.subr.mxu0 0.0
    %104 = vmatpush1.xpose.msra.mxu0 0.0
    %105 = vmatprep.subr.mxu0 0.0
    %106 = vmatpush1.xpose.msra.mxu0 0.0
    %107 = vmatprep.subr.mxu0 0.0
    %108 = vmatpush1.xpose.msra.mxu0 0.0
    %109 = vmatprep.subr.mxu0 0.0
    %110 = vmatpush1.xpose.msra.mxu0 0.0
    %111 = vmatprep.subr.mxu0 0.0
    %112 = vmatpush1.xpose.msra.mxu0 0.0
    %113 = vmatprep.mubr.f32.mxu0 0.0
    %114 = vmatmul.mubr.f32.gmra.mrb[0].mxu0 %v45
    %v115 = vpop.f32.mrb[0].mxu0
    %v116 = vadd.f32 0.0, %v115
    %v117 = vpop.f32.mrb[0].mxu0
    %118 = vmatprep.mubr.f32.mxu0 0.0
    %119 = vmatmul.mubr.f32.gmra.mrb[0].mxu0 %v46
    %v120 = vpop.f32.mrb[0].mxu0
    %v121 = vadd.f32 0.0, %v120
    %v122 = vpop.f32.mrb[0].mxu0
    %123 = vdwg.mxu0
    %v124 = vmul.f32 %v116, 14.285714
    %v125 = vmul.f32 %v121, 14.285714
    %s126 = smul.u32 0, 16
    %v127 = vlaneseq
    %v128 = vshrl.u32 %v127, 7
    %v129 = vadd.s32 %v128, 8
    %v130 = vstv %s126
    %v131 = vadd.s32 %v130, %v128
    %v132 = vadd.s32 %v130, %v129
    %s133 = smul.u32 0, 16
    %v134 = vlaneseq
    %v135 = vand.u32 %v134, 127
    %v136 = vstv %s133
    %v137 = vadd.s32 %v136, %v135
    %vm138 = vcmp.lt.s32.totalorder %v137, 8
    %vm139 = vcmp.ne.s32.totalorder %v131, %v137
    %vm140 = vcmp.ne.s32.totalorder %v132, %v137
    %vm141 = vmand %vm138, %vm139
    %vm142 = vmand %vm138, %vm140
    %v143 = vld [vmem:[%s0] sm:$0xff]
    %v144 = vld [vmem:[%s0 + $0x8] sm:$0xff]
    %v145 = vld [vmem:[%s1] sm:$0x1]
    %146 = vset.pattern.permute.xlu0 0
    %147 = vperm.xlu0 %146, %v143
    %v148 = vpop.permute.xlu0 %147
    %149 = vset.pattern.permute.xlu0 0
    %150 = vperm.xlu0 %149, %v144
    %v151 = vpop.permute.xlu0 %150
    %v152 = vlaneseq
    %v153 = vshrl.u32 %v152, 7
    %v154 = vsub.s32 0, %v153
    %v155 = vrot.slane %v145, %v154
    %vm156 = vcmp.eq.s32.totalorder %v148, %v155
    %vm157 = vcmp.eq.s32.totalorder %v151, %v155
    %vm158 = vmand %vm156, %vm141
    %vm159 = vmand %vm157, %vm142
    %v160 = vld [vmem:[#allocation2] sm:$0xff]
    %v161 = vld [vmem:[#allocation2 + $0x8] sm:$0xff]
    %v162 = vsel %vm138, %v124, -1e+30
    %v163 = vsel %vm138, %v125, -1e+30
    %vm164 = vcmask 130048
    %v165 = vsel %vm164, %v162, -inf
    %166 = vmax.xlane.f32.xlu0 %v165
    %v167 = vpop.xlane.xlu0 %166
    %v168 = vsel %vm164, %v163, -inf
    %169 = vmax.xlane.f32.xlu0 %v168
    %v170 = vpop.xlane.xlu0 %169
    %v171 = vmax.f32 %v160, %v167
    %v172 = vmax.f32 %v161, %v170
    %v173 = vsub.f32 %v160, %v171
    %v174 = vsub.f32 %v161, %v172
    %v175 = vmul.f32 %v173, 1.442695
    %v176 = vpow.pop %v175
    %v177 = vmul.f32 %v174, 1.442695
    %v178 = vpow.pop %v177
    %180 = vset.pattern.permute.xlu0 0
    %181 = vperm.xlu0 %180, %v171
    %v182 = vpop.permute.xlu0 %181
    %185 = vset.pattern.permute.xlu0 0
    %186 = vperm.xlu0 %185, %v172
    %v187 = vpop.permute.xlu0 %186
    %v189 = vsub.f32 %v124, %v182
    %v190 = vsub.f32 %v125, %v187
    %v191 = vmul.f32 %v189, 1.442695
    %v192 = vpow.pop %v191
    %v193 = vmul.f32 %v190, 1.442695
    %v194 = vpow.pop %v193
    %v195 = vsel %vm141, %v192, 0.0
    %v196 = vsel %vm142, %v194, 0.0
    %v197 = vld [vmem:[#allocation3] sm:$0xff]
    %v198 = vld [vmem:[#allocation3 + $0x8] sm:$0xff]
    %v199 = vmul.f32 %v176, %v197
    %v200 = vmul.f32 %v178, %v198
    %v201 = vsel %vm164, %v195, 0.0
    %202 = vadd.xlane.f32.xlu0 %v201
    %v203 = vpop.xlane.xlu0 %202
    %v204 = vsel %vm164, %v196, 0.0
    %205 = vadd.xlane.f32.xlu0 %v204
    %v206 = vpop.xlane.xlu0 %205
    %v207 = vadd.f32 %v199, %v203
    %v208 = vadd.f32 %v200, %v206
    %vm209 = vcmask 7168
    %210 = vst.msk [vmem:[#allocation3] sm:$0xff] %vm209, %v207
    %211 = vst.msk [vmem:[#allocation3 + $0x8] sm:$0xff] %vm209, %v208
    %212 = vst.msk [vmem:[#allocation2] sm:$0xff] %vm209, %v171
    %213 = vst.msk [vmem:[#allocation2 + $0x8] sm:$0xff] %vm209, %v172
    %v214 = vld [vmem:[#allocation4] sm:$0xff]
    %v215 = vld [vmem:[#allocation4 + $0x8] sm:$0xff]
    %v216 = vsel %vm158, %v124, 0.0
    %v217 = vsel %vm159, %v125, 0.0
    %v218 = vsel %vm164, %v216, 0.0
    %219 = vadd.xlane.f32.xlu0 %v218
    %v220 = vpop.xlane.xlu0 %219
    %v221 = vsel %vm164, %v217, 0.0
    %222 = vadd.xlane.f32.xlu0 %v221
    %v223 = vpop.xlane.xlu0 %222
    %v224 = vadd.f32 %v214, %v220
    %v225 = vadd.f32 %v215, %v223
    %226 = vst.msk [vmem:[#allocation4] sm:$0xff] %vm209, %v224
    %227 = vst.msk [vmem:[#allocation4 + $0x8] sm:$0xff] %vm209, %v225
    %v228 = vld [vmem:[#allocation5] sm:$0xff]
    %v229 = vld [vmem:[#allocation5 + $0x8] sm:$0xff]
    %v230 = vsel %vm158, 1, 0
    %v231 = vsel %vm159, 1, 0
    %v232 = vcvt.s32.f32 %v230
    %v233 = vcvt.s32.f32 %v231
    %v234 = vsel %vm164, %v232, 0.0
    %235 = vadd.xlane.f32.xlu0 %v234
    %v236 = vpop.xlane.xlu0 %235
    %v237 = vsel %vm164, %v233, 0.0
    %238 = vadd.xlane.f32.xlu0 %v237
    %v239 = vpop.xlane.xlu0 %238
    %v240 = vadd.f32 %v228, %v236
    %v241 = vadd.f32 %v229, %v239
    %242 = vst.msk [vmem:[#allocation5] sm:$0xff] %vm209, %v240
    %243 = vst.msk [vmem:[#allocation5 + $0x8] sm:$0xff] %vm209, %v241
    // Predicated region
    $region26: #{tpu_custom_call.1} parent=1 // pred_check
      %p244 = pneg %p32
    $region27: #{tpu_custom_call.1} parent=1 // pred_check_branch
      %246 = sbr.rel (%p244) target = $region29
    $region28: #{tpu_custom_call.1} parent=1 // pred_region
      %v247 = vld [vmem:[#allocation2] sm:$0xff]
      %v248 = vld [vmem:[#allocation2 + $0x8] sm:$0xff]
      %v249 = vld [vmem:[#allocation3] sm:$0xff]
      %v250 = vld [vmem:[#allocation3 + $0x8] sm:$0xff]
      %v251 = vlog2.pop %v249
      %v252 = vmul.f32 %v251, 0.6931472
      %v253 = vlog2.pop %v250
      %v254 = vmul.f32 %v253, 0.6931472
      %v255 = vadd.f32 %v247, %v252
      %v256 = vadd.f32 %v248, %v254
      %v257 = vld [vmem:[#allocation5] sm:$0xff]
      %v258 = vld [vmem:[#allocation5 + $0x8] sm:$0xff]
      %v259 = vld [vmem:[#allocation4] sm:$0xff]
      %v260 = vld [vmem:[#allocation4 + $0x8] sm:$0xff]
      %v261 = vmax.f32 %v257, 1.0
      %v262 = vmax.f32 %v258, 1.0
      %v263 = vrcp.pop %v261
      %v264 = vmul.f32 %v259, %v263
      %v265 = vrcp.pop %v262
      %v266 = vmul.f32 %v260, %v265
      %v267 = vsub.f32 %v264, %v255
      %v268 = vsub.f32 %v266, %v256
      %v269 = vmul.f32 %v267, -1.0
      %v270 = vmul.f32 %v268, -1.0
      %vm271 = vcmp.gt.f32.partialorder %v257, 0.0
      %vm272 = vcmp.gt.f32.partialorder %v258, 0.0
      %v273 = vsel %vm271, %v269, 0.0
      %v274 = vsel %vm272, %v270, 0.0
      %276 = vset.pattern.permute.xlu0 0
      %277 = vperm.xlu0 %276, %v273
      %v278 = vpop.permute.xlu0 %277
      %281 = vset.pattern.permute.xlu0 0
      %282 = vperm.xlu0 %281, %v274
      %v283 = vpop.permute.xlu0 %282
      %285 = vst [vmem:[#allocation9] sm:$0xff] %v278
      %286 = vst [vmem:[#allocation9 + $0x8] sm:$0xff] %v283
    $region29: #{tpu_custom_call.1} parent=1 // pred_fallthru
      _
    // Predicated region
    $region30: #{tpu_custom_call.1} parent=1 // pred_check
      _
    $region31: #{tpu_custom_call.1} parent=1 // pred_check_branch
      %288 = sbr.rel (0) target = $region33
    $region32: #{tpu_custom_call.1} parent=1 // pred_region
      %s290 = ssub.s32 256, 256
      %291 = vsyncadd [#allocation8], %s290
      %s292 = sshll.u32 [#allocation9], 4
      %s293 = int_to_ptr.vmem [resolvable:$true] %s292
      %298 = dma.vmem_to_hbm [thread:$0]  %s293, 256, %s4, [#allocation8], 128, 128, 8
    $region33: #{tpu_custom_call.1} parent=1 // pred_fallthru
      _
    // Predicated region
    $region34: #{tpu_custom_call.1} parent=1 // pred_check
      _
    $region35: #{tpu_custom_call.1} parent=1 // pred_check_branch
      %300 = sbr.rel (0) target = $region37
    $region36: #{tpu_custom_call.1} parent=1 // pred_region
      %301 = dma.done [#allocation8], 256
    $region37: #{tpu_custom_call.1} parent=1 // pred_fallthru
      _
    %302 = vsyncpa [#allocation7], 1
    %303 = vsyncpa [#allocation8], 1

</llo_original>
